<compile_context>
chip_gen: v6e
topology: v6e:2x2x1
jax: 0.10.0
libtpu: 0.0.40
codegen_flags: <defaults>
</compile_context>

<pallas_src>
import functools

import jax
import jax.numpy as jnp
from jax import lax
from jax.experimental import pallas as pl
from jax.experimental.pallas import tpu as pltpu

BN_EPS = 1e-5
L2_EPS = 1e-12


def _pick_spatial_tile(s, cap=8192):
    """Largest spatial tile: the whole S if it fits, else the largest
    lane-aligned (multiple-of-128) divisor of S that is <= cap."""
    if s <= cap:
        return s
    t = (cap // 128) * 128
    while t >= 128:
        if s % t == 0:
            return t
        t -= 128
    return s  # no aligned divisor; take the whole axis in one step


def _pick_chunk(tile_s, cap=512):
    """Inner fused chunk (lanes) so the f32 working set stays register-resident."""
    if tile_s <= cap:
        return tile_s
    for c in (512, 384, 256, 128):
        if tile_s % c == 0:
            return c
    return tile_s  # fall back: no inner chunking


def domain_robust_kernel(x_ref, w_bbT_ref, b_bb_ref,
                         bn_scale_ref, bn_shift_ref,
                         w_clsT_ref, b_cls_ref,
                         logits_ref, feats_ref,
                         acc_ref, *, inv_s, chunk):
    s_idx = pl.program_id(1)

    @pl.when(s_idx == 0)
    def _init():
        acc_ref[...] = jnp.zeros_like(acc_ref)

    _, _, ts = x_ref.shape

    # --- backbone stand-in: pointwise (1x1) conv + ReLU over spatial positions ---
    # TODO(synk): the real module wraps a pretrained torchvision backbone
    # (resnet18/resnet50/vgg16/...); that deep pretrained conv stack has no clean
    # in-script equivalent, so a deterministic pointwise conv producing
    # feature_dim channels stands in for it.
    #
    # Fused matmul -> bias -> ReLU -> partial spatial sum over static lane
    # chunks: each (F, chunk) f32 block stays register-resident and only the
    # (F, 1) partial sum touches the VMEM accumulator.
    w = w_bbT_ref[...]        # (F, C) f32, resident across the grid
    bias = b_bb_ref[...]      # (F, 1)
    n_chunks = ts // chunk
    for ci in range(n_chunks):  # static -> fully unrolled, static slices
        xc = x_ref[0, :, ci * chunk:(ci + 1) * chunk]              # (C, chunk)
        hc = jnp.dot(w, xc, preferred_element_type=jnp.float32)    # (F, chunk) MXU
        hc = jnp.maximum(hc + bias, 0.0)                           # bias + ReLU (VPU)
        acc_ref[...] += hc.sum(axis=-1, keepdims=True)             # partial spatial sum

    @pl.when(s_idx == pl.num_programs(1) - 1)
    def _epilogue():
        # adaptive_avg_pool2d((1,1)) + squeeze -> mean over spatial positions.
        feats = acc_ref[...] * inv_s                               # (F, 1)
        # BatchNorm1d (eval): single FMA with host-folded scale/shift.
        feats = feats * bn_scale_ref[...] + bn_shift_ref[...]
        # F.normalize(p=2, dim=1): x / max(||x||, eps) == x * rsqrt(max(sumsq, eps^2))
        sumsq = jnp.sum(feats * feats, axis=0, keepdims=True)      # (1, 1)
        feats = feats * lax.rsqrt(jnp.maximum(sumsq, L2_EPS * L2_EPS))
        feats_ref[0] = feats.astype(feats_ref.dtype)               # (F, 1) column
        # Dropout: identity in eval mode.
        # Classifier Linear(feature_dim, num_classes), kept in f32 (tiny matmul).
        logits = jnp.dot(w_clsT_ref[...], feats,
                         preferred_element_type=jnp.float32)       # (N, 1)
        logits_ref[0] = (logits + b_cls_ref[...]).astype(logits_ref.dtype)


def init_params(key, in_channels, feature_dim, num_classes):
    ks = jax.random.split(key, 6)
    return {
        # stand-in backbone (pointwise conv)
        "w_bb":  jax.random.normal(ks[0], (in_channels, feature_dim), jnp.float32) * 0.1,
        "b_bb":  jax.random.normal(ks[1], (feature_dim,), jnp.float32) * 0.01,
        # BatchNorm1d(feature_dim) affine params + running stats (non-trivial)
        "gamma": 1.0 + 0.1 * jax.random.normal(ks[2], (feature_dim,), jnp.float32),
        "beta":  0.1 * jax.random.normal(ks[3], (feature_dim,), jnp.float32),
        "rmean": 0.05 * jax.random.normal(ks[4], (feature_dim,), jnp.float32),
        "rvar":  jnp.ones((feature_dim,), jnp.float32),
        # classifier Linear(feature_dim, num_classes)
        "w_cls": jax.random.normal(ks[5], (feature_dim, num_classes), jnp.float32)
                 / jnp.sqrt(float(feature_dim)),
        "b_cls": jnp.zeros((num_classes,), jnp.float32),
    }


def domain_robust_forward(x_nchw, params, return_features=False):
    B, C, H, W = x_nchw.shape
    S = H * W
    feature_dim, num_classes = params["w_cls"].shape

    tile_S = _pick_spatial_tile(S)
    chunk = _pick_chunk(tile_S)
    grid = (B, S // tile_S)   # batch first ("parallel", >=2 steps for B>=2), S last

    # Free reshape only: no transpose, no channel padding, no host-side cast.
    x = x_nchw.reshape(B, C, S)

    # Tiny parameter massaging (trace-time, negligible): column layouts so the
    # kernel never has to transpose.
    w_bbT = params["w_bb"].T                                   # (F, C)
    b_bb = params["b_bb"].reshape(feature_dim, 1)
    scale = params["gamma"] * lax.rsqrt(params["rvar"] + BN_EPS)
    shift = params["beta"] - params["rmean"] * scale
    bn_scale = scale.reshape(feature_dim, 1)
    bn_shift = shift.reshape(feature_dim, 1)
    w_clsT = params["w_cls"].T                                 # (N, F)
    b_cls = params["b_cls"].reshape(num_classes, 1)

    in_specs = [
        # x: streamed over (batch, S-tile); last dims (C, tile_S) where C equals
        # the full array dim (legal, unpadded) and tile_S is lane-aligned or == S.
        pl.BlockSpec((1, C, tile_S), lambda b, s: (b, 0, s)),
        pl.BlockSpec((feature_dim, C), lambda b, s: (0, 0)),   # w_bbT (resident)
        pl.BlockSpec((feature_dim, 1), lambda b, s: (0, 0)),   # b_bb
        pl.BlockSpec((feature_dim, 1), lambda b, s: (0, 0)),   # bn_scale
        pl.BlockSpec((feature_dim, 1), lambda b, s: (0, 0)),   # bn_shift
        pl.BlockSpec((num_classes, feature_dim), lambda b, s: (0, 0)),  # w_clsT
        pl.BlockSpec((num_classes, 1), lambda b, s: (0, 0)),   # b_cls
    ]
    out_specs = [
        pl.BlockSpec((1, num_classes, 1), lambda b, s: (b, 0, 0)),  # logits columns
        pl.BlockSpec((1, feature_dim, 1), lambda b, s: (b, 0, 0)),  # feature columns
    ]

    kernel = functools.partial(domain_robust_kernel,
                               inv_s=1.0 / float(S), chunk=chunk)

    logits_col, feats_col = pl.pallas_call(
        kernel,
        grid=grid,
        in_specs=in_specs,
        out_specs=out_specs,
        out_shape=(jax.ShapeDtypeStruct((B, num_classes, 1), jnp.float32),
                   jax.ShapeDtypeStruct((B, feature_dim, 1), jnp.float32)),
        scratch_shapes=[pltpu.VMEM((feature_dim, 1), jnp.float32)],
        compiler_params=pltpu.CompilerParams(
            dimension_semantics=("parallel", "arbitrary"),
            # explicit, v7x-safe scoped-VMEM budget (footprint is far below it)
            vmem_limit_bytes=32 * 1024 * 1024,
        ),
    )(x, w_bbT, b_bb, bn_scale, bn_shift, w_clsT, b_cls)

    logits = logits_col.reshape(B, num_classes)
    feats = feats_col.reshape(B, feature_dim)
    if return_features:
        return logits, feats
    return logits


def _reference_forward(x_nchw, params):
    """Pure-JAX reference of the same eval-mode forward (for correctness check)."""
    B, C, H, W = x_nchw.shape
    x = jnp.transpose(x_nchw, (0, 2, 3, 1)).reshape(B, H * W, C)
    h = jnp.maximum(jnp.einsum("bsc,cf->bsf", x, params["w_bb"]) + params["b_bb"], 0.0)
    feats = h.mean(axis=1)
    feats = ((feats - params["rmean"])
             * (params["gamma"] * lax.rsqrt(params["rvar"] + BN_EPS))
             + params["beta"])
    norm = jnp.maximum(jnp.sqrt(jnp.sum(feats * feats, axis=1, keepdims=True)), L2_EPS)
    feats = feats / norm
    logits = feats @ params["w_cls"] + params["b_cls"]
    return logits, feats


if __name__ == "__main__":
    # Small shapes consistent with the module's forward.
    B, C, H, W = 2, 4, 16, 16
    feature_dim, num_classes = 32, 8

    key = jax.random.PRNGKey(0)
    k_x, k_p = jax.random.split(key)
    x = jax.random.normal(k_x, (B, C, H, W), jnp.float32)
    params = init_params(k_p, C, feature_dim, num_classes)

    logits, feats = jax.jit(
        lambda a, p: domain_robust_forward(a, p, return_features=True)
    )(x, params)
    jax.block_until_ready((logits, feats))

    assert logits.shape == (B, num_classes)
    assert feats.shape == (B, feature_dim)
    assert bool(jnp.all(jnp.isfinite(logits)))
    # features are L2-normalized along dim=1
    assert bool(jnp.allclose(jnp.linalg.norm(feats, axis=1), 1.0, atol=1e-3))

    # pure-JAX reference check (loose tolerance for MXU matmul accumulation)
    ref_logits, ref_feats = _reference_forward(x, params)
    assert bool(jnp.allclose(feats, ref_feats, atol=5e-3, rtol=5e-3))
    assert bool(jnp.allclose(logits, ref_logits, atol=5e-3, rtol=5e-3))

    print("KERNEL_OK")
</pallas_src>

<mosaic_0001>
module attributes {stable_mosaic.version = 11 : i64} {
  func.func @domain_robust_kernel(%arg0: i32, %arg1: i32, %arg2: memref<1x4x256xf32, #tpu.memory_space<vmem>>, %arg3: memref<32x4xf32, #tpu.memory_space<vmem>>, %arg4: memref<32x1xf32, #tpu.memory_space<vmem>>, %arg5: memref<32x1xf32, #tpu.memory_space<vmem>>, %arg6: memref<32x1xf32, #tpu.memory_space<vmem>>, %arg7: memref<8x32xf32, #tpu.memory_space<vmem>>, %arg8: memref<8x1xf32, #tpu.memory_space<vmem>>, %arg9: memref<1x8x1xf32, #tpu.memory_space<vmem>>, %arg10: memref<1x32x1xf32, #tpu.memory_space<vmem>>, %arg11: memref<32x1xf32, #tpu.memory_space<vmem>>) attributes {dimension_semantics = [#tpu.dimension_semantics<parallel>, #tpu.dimension_semantics<arbitrary>], iteration_bounds = array<i64: 2, 1>, scalar_prefetch = 0 : i64, scratch_operands = 1 : i64, tpu.core_type = #tpu.core_type<tc>, window_params = [{transform_indices = @transform_0, window_bounds = array<i64: 1, 4, 256>}, {pipeline_mode = #tpu.pipeline_mode<synchronous>, transform_indices = @transform_1, window_bounds = array<i64: 32, 4>}, {pipeline_mode = #tpu.pipeline_mode<synchronous>, transform_indices = @transform_2, window_bounds = array<i64: 32, 1>}, {pipeline_mode = #tpu.pipeline_mode<synchronous>, transform_indices = @transform_3, window_bounds = array<i64: 32, 1>}, {pipeline_mode = #tpu.pipeline_mode<synchronous>, transform_indices = @transform_4, window_bounds = array<i64: 32, 1>}, {pipeline_mode = #tpu.pipeline_mode<synchronous>, transform_indices = @transform_5, window_bounds = array<i64: 8, 32>}, {pipeline_mode = #tpu.pipeline_mode<synchronous>, transform_indices = @transform_6, window_bounds = array<i64: 8, 1>}, {transform_indices = @transform_7, window_bounds = array<i64: 1, 8, 1>}, {transform_indices = @transform_8, window_bounds = array<i64: 1, 32, 1>}]} {
    %c0_i32 = arith.constant 0 : i32
    %0 = arith.cmpi eq, %arg1, %c0_i32 : i32
    %1 = arith.extui %0 : i1 to i32
    %c0_i32_0 = arith.constant 0 : i32
    %2 = arith.cmpi ne, %1, %c0_i32_0 : i32
    scf.if %2 {
      %cst_15 = arith.constant 0.000000e+00 : f32
      %20 = vector.broadcast %cst_15 : f32 to vector<32x1xf32>
      %c0_16 = arith.constant 0 : index
      %c0_17 = arith.constant 0 : index
      %21 = vector.load %arg11[%c0_16, %c0_17] : memref<32x1xf32, #tpu.memory_space<vmem>>, vector<32x1xf32>
      tpu.vector_store %arg11[%c0_16, %c0_17], %20 {strides = array<i32>} : memref<32x1xf32, #tpu.memory_space<vmem>>, vector<32x1xf32>,
    } else {
    }
    %c0 = arith.constant 0 : index
    %c0_1 = arith.constant 0 : index
    %3 = vector.load %arg3[%c0, %c0_1] : memref<32x4xf32, #tpu.memory_space<vmem>>, vector<32x4xf32>
    %c0_2 = arith.constant 0 : index
    %c0_3 = arith.constant 0 : index
    %4 = vector.load %arg4[%c0_2, %c0_3] : memref<32x1xf32, #tpu.memory_space<vmem>>, vector<32x1xf32>
    %c0_4 = arith.constant 0 : index
    %c0_5 = arith.constant 0 : index
    %c0_6 = arith.constant 0 : index
    %5 = vector.load %arg2[%c0_4, %c0_5, %c0_6] : memref<1x4x256xf32, #tpu.memory_space<vmem>>, vector<1x4x256xf32>
    %6 = vector.shape_cast %5 : vector<1x4x256xf32> to vector<4x256xf32>
    %cst = arith.constant dense<0.000000e+00> : vector<32x256xf32>
    %7 = tpu.matmul %3, %6, %cst {dimension_numbers = #tpu.dot_dimension_numbers<[1], [0], [0], [1], [0, 0, 1, 1], [], []>} : vector<32x4xf32>, vector<4x256xf32>, vector<32x256xf32> -> vector<32x256xf32>
    %8 = vector.broadcast %4 : vector<32x1xf32> to vector<32x256xf32>
    %9 = arith.addf %7, %8 : vector<32x256xf32>
    %cst_7 = arith.constant 0.000000e+00 : f32
    %10 = vector.broadcast %cst_7 : f32 to vector<32x256xf32>
    %11 = arith.maximumf %9, %10 : vector<32x256xf32>
    %c0_8 = arith.constant 0 : index
    %c0_9 = arith.constant 0 : index
    %12 = vector.load %arg11[%c0_8, %c0_9] : memref<32x1xf32, #tpu.memory_space<vmem>>, vector<32x1xf32>
    %cst_10 = arith.constant dense<0.000000e+00> : vector<32xf32>
    %13 = vector.multi_reduction <add>, %11, %cst_10 [1] : vector<32x256xf32> to vector<32xf32>
    %14 = vector.shape_cast %13 : vector<32xf32> to vector<32x1xf32>
    %15 = arith.addf %12, %14 : vector<32x1xf32>
    %c0_11 = arith.constant 0 : index
    %c0_12 = arith.constant 0 : index
    %16 = vector.load %arg11[%c0_11, %c0_12] : memref<32x1xf32, #tpu.memory_space<vmem>>, vector<32x1xf32>
    tpu.vector_store %arg11[%c0_11, %c0_12], %15 {strides = array<i32>} : memref<32x1xf32, #tpu.memory_space<vmem>>, vector<32x1xf32>,
    %c0_i32_13 = arith.constant 0 : i32
    %17 = arith.cmpi eq, %arg1, %c0_i32_13 : i32
    %18 = arith.extui %17 : i1 to i32
    %c0_i32_14 = arith.constant 0 : i32
    %19 = arith.cmpi ne, %18, %c0_i32_14 : i32
    scf.if %19 {
      %c0_15 = arith.constant 0 : index
      %c0_16 = arith.constant 0 : index
      %20 = vector.load %arg11[%c0_15, %c0_16] : memref<32x1xf32, #tpu.memory_space<vmem>>, vector<32x1xf32>
      %cst_17 = arith.constant 3.906250e-03 : f32
      %21 = vector.broadcast %cst_17 : f32 to vector<32x1xf32>
      %22 = arith.mulf %20, %21 : vector<32x1xf32>
      %c0_18 = arith.constant 0 : index
      %c0_19 = arith.constant 0 : index
      %23 = vector.load %arg5[%c0_18, %c0_19] : memref<32x1xf32, #tpu.memory_space<vmem>>, vector<32x1xf32>
      %24 = arith.mulf %22, %23 : vector<32x1xf32>
      %c0_20 = arith.constant 0 : index
      %c0_21 = arith.constant 0 : index
      %25 = vector.load %arg6[%c0_20, %c0_21] : memref<32x1xf32, #tpu.memory_space<vmem>>, vector<32x1xf32>
      %26 = arith.addf %24, %25 : vector<32x1xf32>
      %27 = arith.mulf %26, %26 : vector<32x1xf32>
      %cst_22 = arith.constant dense<0.000000e+00> : vector<1xf32>
      %28 = vector.multi_reduction <add>, %27, %cst_22 [0] : vector<32x1xf32> to vector<1xf32>
      %29 = vector.shape_cast %28 : vector<1xf32> to vector<1x1xf32>
      %cst_23 = arith.constant 1.000000e-24 : f32
      %30 = vector.broadcast %cst_23 : f32 to vector<1x1xf32>
      %31 = arith.maximumf %29, %30 : vector<1x1xf32>
      %32 = math.rsqrt %31 : vector<1x1xf32>
      %33 = vector.broadcast %32 : vector<1x1xf32> to vector<32x1xf32>
      %34 = arith.mulf %26, %33 : vector<32x1xf32>
      %c0_24 = arith.constant 0 : index
      %c0_25 = arith.constant 0 : index
      %c0_26 = arith.constant 0 : index
      %35 = vector.load %arg10[%c0_24, %c0_25, %c0_26] : memref<1x32x1xf32, #tpu.memory_space<vmem>>, vector<1x32x1xf32>
      %36 = vector.shape_cast %35 : vector<1x32x1xf32> to vector<32x1xf32>
      %37 = vector.shape_cast %34 : vector<32x1xf32> to vector<1x32x1xf32>
      tpu.vector_store %arg10[%c0_24, %c0_25, %c0_26], %37 {strides = array<i32>} : memref<1x32x1xf32, #tpu.memory_space<vmem>>, vector<1x32x1xf32>,
      %c0_27 = arith.constant 0 : index
      %c0_28 = arith.constant 0 : index
      %38 = vector.load %arg7[%c0_27, %c0_28] : memref<8x32xf32, #tpu.memory_space<vmem>>, vector<8x32xf32>
      %cst_29 = arith.constant dense<0.000000e+00> : vector<8x1xf32>
      %39 = tpu.matmul %38, %34, %cst_29 {dimension_numbers = #tpu.dot_dimension_numbers<[1], [0], [0], [1], [0, 0, 1, 1], [], []>} : vector<8x32xf32>, vector<32x1xf32>, vector<8x1xf32> -> vector<8x1xf32>
      %c0_30 = arith.constant 0 : index
      %c0_31 = arith.constant 0 : index
      %40 = vector.load %arg8[%c0_30, %c0_31] : memref<8x1xf32, #tpu.memory_space<vmem>>, vector<8x1xf32>
      %41 = arith.addf %39, %40 : vector<8x1xf32>
      %c0_32 = arith.constant 0 : index
      %c0_33 = arith.constant 0 : index
      %c0_34 = arith.constant 0 : index
      %42 = vector.load %arg9[%c0_32, %c0_33, %c0_34] : memref<1x8x1xf32, #tpu.memory_space<vmem>>, vector<1x8x1xf32>
      %43 = vector.shape_cast %42 : vector<1x8x1xf32> to vector<8x1xf32>
      %44 = vector.shape_cast %41 : vector<8x1xf32> to vector<1x8x1xf32>
      tpu.vector_store %arg9[%c0_32, %c0_33, %c0_34], %44 {strides = array<i32>} : memref<1x8x1xf32, #tpu.memory_space<vmem>>, vector<1x8x1xf32>,
    } else {
    }
    return
  }
  func.func @transform_0(%arg0: i32, %arg1: i32) -> (i32, i32, i32) {
    %c0_i32 = arith.constant 0 : i32
    %c0_i32_0 = arith.constant 0 : i32
    return %arg0, %c0_i32, %arg1 : i32, i32, i32
  }
  func.func @transform_1(%arg0: i32, %arg1: i32) -> (i32, i32) {
    %c0_i32 = arith.constant 0 : i32
    %c0_i32_0 = arith.constant 0 : i32
    %c0_i32_1 = arith.constant 0 : i32
    return %c0_i32, %c0_i32_0 : i32, i32
  }
  func.func @transform_2(%arg0: i32, %arg1: i32) -> (i32, i32) {
    %c0_i32 = arith.constant 0 : i32
    %c0_i32_0 = arith.constant 0 : i32
    %c0_i32_1 = arith.constant 0 : i32
    return %c0_i32, %c0_i32_0 : i32, i32
  }
  func.func @transform_3(%arg0: i32, %arg1: i32) -> (i32, i32) {
    %c0_i32 = arith.constant 0 : i32
    %c0_i32_0 = arith.constant 0 : i32
    %c0_i32_1 = arith.constant 0 : i32
    return %c0_i32, %c0_i32_0 : i32, i32
  }
  func.func @transform_4(%arg0: i32, %arg1: i32) -> (i32, i32) {
    %c0_i32 = arith.constant 0 : i32
    %c0_i32_0 = arith.constant 0 : i32
    %c0_i32_1 = arith.constant 0 : i32
    return %c0_i32, %c0_i32_0 : i32, i32
  }
  func.func @transform_5(%arg0: i32, %arg1: i32) -> (i32, i32) {
    %c0_i32 = arith.constant 0 : i32
    %c0_i32_0 = arith.constant 0 : i32
    %c0_i32_1 = arith.constant 0 : i32
    return %c0_i32, %c0_i32_0 : i32, i32
  }
  func.func @transform_6(%arg0: i32, %arg1: i32) -> (i32, i32) {
    %c0_i32 = arith.constant 0 : i32
    %c0_i32_0 = arith.constant 0 : i32
    %c0_i32_1 = arith.constant 0 : i32
    return %c0_i32, %c0_i32_0 : i32, i32
  }
  func.func @transform_7(%arg0: i32, %arg1: i32) -> (i32, i32, i32) {
    %c0_i32 = arith.constant 0 : i32
    %c0_i32_0 = arith.constant 0 : i32
    %c0_i32_1 = arith.constant 0 : i32
    return %arg0, %c0_i32, %c0_i32_0 : i32, i32, i32
  }
  func.func @transform_8(%arg0: i32, %arg1: i32) -> (i32, i32, i32) {
    %c0_i32 = arith.constant 0 : i32
    %c0_i32_0 = arith.constant 0 : i32
    %c0_i32_1 = arith.constant 0 : i32
    return %arg0, %c0_i32, %c0_i32_0 : i32, i32, i32
  }
}

</mosaic_0001>

<llo_original>
// kernel: _lambda_.1
$region0: #{_lambda_.1}
  #allocation0 [shape = 'u32[]', space=smem, size = 0x4, offset = 0x4, fixed_abs, tag = 'smem constant byte address 0x4 - core index']
  #allocation1 [shape = 'u32[144,128]{1,0:T(1,128)}', space=vmem, size = 0x12000, scoped, tag = 'internal scratch']
  #allocation2 [shape = 'f32[32,1]{1,0:T(8,128)}', space=vmem, size = 0x4000, scoped, tag = 'scratch operand']
  %s0 = inlined_call_operand.vmem [shape: f32[2,4,256], index: 0, kind: input, shape index: {}]
  %s1 = inlined_call_operand.vmem [shape: f32[32,4], index: 1, kind: input, shape index: {}]
  %s2 = inlined_call_operand.vmem [shape: f32[32,1], index: 2, kind: input, shape index: {}]
  %s3 = inlined_call_operand.vmem [shape: f32[32,1], index: 3, kind: input, shape index: {}]
  %s4 = inlined_call_operand.vmem [shape: f32[32,1], index: 4, kind: input, shape index: {}]
  %s5 = inlined_call_operand.vmem [shape: f32[8,32], index: 5, kind: input, shape index: {}]
  %s6 = inlined_call_operand.vmem [shape: f32[8,1], index: 6, kind: input, shape index: {}]
  %s7 = inlined_call_operand.vmem [shape: f32[2,8,1], index: 7, kind: output, shape index: {0}]
  %s8 = inlined_call_operand.vmem [shape: f32[2,32,1], index: 8, kind: output, shape index: {1}]
  %9 = xla_tuple %s7, %s8
  %s10 = sld [smem:[#allocation0]]
  $region77: #{_lambda_.1} parent=0
    _
  %s12 = ssub.s32 1, %s10
  %s13 = scalar_select 0, %s12, %s10
  loop: start=0, step=1, limit=4
  $region2: #{_lambda_.1} parent=0 // loop_pre_header
    _
  $region3: #{_lambda_.1} parent=0 // loop_header
    %s15 = sphi 0, %s19
    %p16 = scmp.ge.s32.totalorder %s15, 4
    %s22 = sphi 0, %s34
    %s23 = sphi 0, %s30
    %s24 = sphi 0, %s22
    %s25 = sphi 0, %s23
    %s26 = sphi 0, %s24
    %s27 = sphi 0, %s25
    %s39 = sphi 0, %s41
    %s42 = sphi 0, %s39
    %s43 = sphi 0, %s42
    %s59 = sphi 0, %s43
    %s63 = sphi 0, %s63
    %s65 = sphi 0, %s63
    %s66 = sphi 0, %s65
    %s80 = sphi 0, %s66
    %s84 = sphi 0, %s84
    %s86 = sphi 0, %s84
    %s87 = sphi 0, %s86
    %s101 = sphi 0, %s87
    %s105 = sphi 0, %s105
    %s107 = sphi 0, %s105
    %s108 = sphi 0, %s107
    %s122 = sphi 0, %s108
    %s126 = sphi 0, %s126
    %s128 = sphi 0, %s126
    %s129 = sphi 0, %s128
    %s143 = sphi 0, %s129
    %s147 = sphi 0, %s147
    %s149 = sphi 0, %s147
    %s150 = sphi 0, %s149
    %s164 = sphi 0, %s150
    %s168 = sphi 0, %s168
    %s170 = sphi 0, %s168
    %s171 = sphi 0, %s170
    %s185 = sphi 0, %s171
    %s191 = sphi 0, %s193
    %s194 = sphi 0, %s191
    %s195 = sphi 0, %s194
    %s211 = sphi 0, %s195
    %s217 = sphi 0, %s219
    %s220 = sphi 0, %s217
    %s221 = sphi 0, %s220
    %s237 = sphi 0, %s221
  $region4: #{_lambda_.1} parent=0 // loop_header_branch
    %18 = sbr.rel (%p16) target = $region8
  $region5: #{_lambda_.1} parent=0 // loop_body
    %s20 = ssub.s32 %s15, 1
    %s21 = ssub.s32 %s15, 2
    %s28 = sadd.s32 1, %s23
    %p29 = scmp.ge.s32.totalorder %s28, 1
    %s30 = scalar_select %p29, 0, %s28
    %s31 = sadd.s32 1, %s22
    %s32 = scalar_select %p29, %s31, %s22
    %p33 = scmp.ge.s32.totalorder %s32, 2
    %s34 = scalar_select %p33, 0, %s32
    %s35 = ssub.s32 %s22, %s34
    %s36 = ssub.s32 %s23, %s30
    %s37 = sor.u32 %s35, %s36
    %p38 = scmp.eq.s32.totalorder %s37, 0
    %s40 = sadd.s32 %s39, 1
    %s41 = scalar_select %p38, %s39, %s40
    %p44 = pneg %p38
    %p45 = scmp.eq.s32.totalorder %s15, 1
    %p46 = por %p44, %p45
    %p47 = scmp.ne.s32.totalorder %s39, %s42
    %p48 = scmp.eq.s32.totalorder %s15, 0
    %p49 = por %p47, %p48
    %p50 = scmp.ne.s32.totalorder %s39, %s42
    %p51 = scmp.eq.s32.totalorder %s20, 1
    %p52 = por %p50, %p51
    %p53 = scmp.ne.s32.totalorder %s42, %s43
    %p54 = scmp.eq.s32.totalorder %s20, 0
    %p55 = por %p53, %p54
    %p56 = scmp.ne.s32.totalorder %s42, %s43
    %p57 = scmp.eq.s32.totalorder %s21, 1
    %p58 = por %p56, %p57
    %p60 = scmp.ne.s32.totalorder %s43, %s59
    %p61 = scmp.eq.s32.totalorder %s21, 0
    %p62 = por %p60, %p61
    %s64 = sadd.s32 %s63, 1
    %p67 = scmp.eq.s32.totalorder %s15, 1
    %p68 = scmp.ne.s32.totalorder %s63, %s65
    %p69 = scmp.eq.s32.totalorder %s15, 0
    %p70 = por %p68, %p69
    %p71 = scmp.ne.s32.totalorder %s63, %s65
    %p72 = scmp.eq.s32.totalorder %s20, 1
    %p73 = por %p71, %p72
    %p74 = scmp.ne.s32.totalorder %s65, %s66
    %p75 = scmp.eq.s32.totalorder %s20, 0
    %p76 = por %p74, %p75
    %p77 = scmp.ne.s32.totalorder %s65, %s66
    %p78 = scmp.eq.s32.totalorder %s21, 1
    %p79 = por %p77, %p78
    %p81 = scmp.ne.s32.totalorder %s66, %s80
    %p82 = scmp.eq.s32.totalorder %s21, 0
    %p83 = por %p81, %p82
    %s85 = sadd.s32 %s84, 1
    %p88 = scmp.eq.s32.totalorder %s15, 1
    %p89 = scmp.ne.s32.totalorder %s84, %s86
    %p90 = scmp.eq.s32.totalorder %s15, 0
    %p91 = por %p89, %p90
    %p92 = scmp.ne.s32.totalorder %s84, %s86
    %p93 = scmp.eq.s32.totalorder %s20, 1
    %p94 = por %p92, %p93
    %p95 = scmp.ne.s32.totalorder %s86, %s87
    %p96 = scmp.eq.s32.totalorder %s20, 0
    %p97 = por %p95, %p96
    %p98 = scmp.ne.s32.totalorder %s86, %s87
    %p99 = scmp.eq.s32.totalorder %s21, 1
    %p100 = por %p98, %p99
    %p102 = scmp.ne.s32.totalorder %s87, %s101
    %p103 = scmp.eq.s32.totalorder %s21, 0
    %p104 = por %p102, %p103
    %s106 = sadd.s32 %s105, 1
    %p109 = scmp.eq.s32.totalorder %s15, 1
    %p110 = scmp.ne.s32.totalorder %s105, %s107
    %p111 = scmp.eq.s32.totalorder %s15, 0
    %p112 = por %p110, %p111
    %p113 = scmp.ne.s32.totalorder %s105, %s107
    %p114 = scmp.eq.s32.totalorder %s20, 1
    %p115 = por %p113, %p114
    %p116 = scmp.ne.s32.totalorder %s107, %s108
    %p117 = scmp.eq.s32.totalorder %s20, 0
    %p118 = por %p116, %p117
    %p119 = scmp.ne.s32.totalorder %s107, %s108
    %p120 = scmp.eq.s32.totalorder %s21, 1
    %p121 = por %p119, %p120
    %p123 = scmp.ne.s32.totalorder %s108, %s122
    %p124 = scmp.eq.s32.totalorder %s21, 0
    %p125 = por %p123, %p124
    %s127 = sadd.s32 %s126, 1
    %p130 = scmp.eq.s32.totalorder %s15, 1
    %p131 = scmp.ne.s32.totalorder %s126, %s128
    %p132 = scmp.eq.s32.totalorder %s15, 0
    %p133 = por %p131, %p132
    %p134 = scmp.ne.s32.totalorder %s126, %s128
    %p135 = scmp.eq.s32.totalorder %s20, 1
    %p136 = por %p134, %p135
    %p137 = scmp.ne.s32.totalorder %s128, %s129
    %p138 = scmp.eq.s32.totalorder %s20, 0
    %p139 = por %p137, %p138
    %p140 = scmp.ne.s32.totalorder %s128, %s129
    %p141 = scmp.eq.s32.totalorder %s21, 1
    %p142 = por %p140, %p141
    %p144 = scmp.ne.s32.totalorder %s129, %s143
    %p145 = scmp.eq.s32.totalorder %s21, 0
    %p146 = por %p144, %p145
    %s148 = sadd.s32 %s147, 1
    %p151 = scmp.eq.s32.totalorder %s15, 1
    %p152 = scmp.ne.s32.totalorder %s147, %s149
    %p153 = scmp.eq.s32.totalorder %s15, 0
    %p154 = por %p152, %p153
    %p155 = scmp.ne.s32.totalorder %s147, %s149
    %p156 = scmp.eq.s32.totalorder %s20, 1
    %p157 = por %p155, %p156
    %p158 = scmp.ne.s32.totalorder %s149, %s150
    %p159 = scmp.eq.s32.totalorder %s20, 0
    %p160 = por %p158, %p159
    %p161 = scmp.ne.s32.totalorder %s149, %s150
    %p162 = scmp.eq.s32.totalorder %s21, 1
    %p163 = por %p161, %p162
    %p165 = scmp.ne.s32.totalorder %s150, %s164
    %p166 = scmp.eq.s32.totalorder %s21, 0
    %p167 = por %p165, %p166
    %s169 = sadd.s32 %s168, 1
    %p172 = scmp.eq.s32.totalorder %s15, 1
    %p173 = scmp.ne.s32.totalorder %s168, %s170
    %p174 = scmp.eq.s32.totalorder %s15, 0
    %p175 = por %p173, %p174
    %p176 = scmp.ne.s32.totalorder %s168, %s170
    %p177 = scmp.eq.s32.totalorder %s20, 1
    %p178 = por %p176, %p177
    %p179 = scmp.ne.s32.totalorder %s170, %s171
    %p180 = scmp.eq.s32.totalorder %s20, 0
    %p181 = por %p179, %p180
    %p182 = scmp.ne.s32.totalorder %s170, %s171
    %p183 = scmp.eq.s32.totalorder %s21, 1
    %p184 = por %p182, %p183
    %p186 = scmp.ne.s32.totalorder %s171, %s185
    %p187 = scmp.eq.s32.totalorder %s21, 0
    %p188 = por %p186, %p187
    %s189 = ssub.s32 %s22, %s34
    %p190 = scmp.eq.s32.totalorder %s189, 0
    %s192 = sadd.s32 %s191, 1
    %s193 = scalar_select %p190, %s191, %s192
    %p196 = pneg %p190
    %p197 = scmp.eq.s32.totalorder %s15, 1
    %p198 = por %p196, %p197
    %p199 = scmp.ne.s32.totalorder %s191, %s194
    %p200 = scmp.eq.s32.totalorder %s15, 0
    %p201 = por %p199, %p200
    %p202 = scmp.ne.s32.totalorder %s191, %s194
    %p203 = scmp.eq.s32.totalorder %s20, 1
    %p204 = por %p202, %p203
    %p205 = scmp.ne.s32.totalorder %s194, %s195
    %p206 = scmp.eq.s32.totalorder %s20, 0
    %p207 = por %p205, %p206
    %p208 = scmp.ne.s32.totalorder %s194, %s195
    %p209 = scmp.eq.s32.totalorder %s21, 1
    %p210 = por %p208, %p209
    %p212 = scmp.ne.s32.totalorder %s195, %s211
    %p213 = scmp.eq.s32.totalorder %s21, 0
    %p214 = por %p212, %p213
    %s215 = ssub.s32 %s22, %s34
    %p216 = scmp.eq.s32.totalorder %s215, 0
    %s218 = sadd.s32 %s217, 1
    %s219 = scalar_select %p216, %s217, %s218
    %p222 = pneg %p216
    %p223 = scmp.eq.s32.totalorder %s15, 1
    %p224 = por %p222, %p223
    %p225 = scmp.ne.s32.totalorder %s217, %s220
    %p226 = scmp.eq.s32.totalorder %s15, 0
    %p227 = por %p225, %p226
    %p228 = scmp.ne.s32.totalorder %s217, %s220
    %p229 = scmp.eq.s32.totalorder %s20, 1
    %p230 = por %p228, %p229
    %p231 = scmp.ne.s32.totalorder %s220, %s221
    %p232 = scmp.eq.s32.totalorder %s20, 0
    %p233 = por %p231, %p232
    %p234 = scmp.ne.s32.totalorder %s220, %s221
    %p235 = scmp.eq.s32.totalorder %s21, 1
    %p236 = por %p234, %p235
    %p238 = scmp.ne.s32.totalorder %s221, %s237
    %p239 = scmp.eq.s32.totalorder %s21, 0
    %p240 = por %p238, %p239
    %p241 = scmp.le.s32.totalorder 1, %s15
    %p242 = scmp.lt.s32.totalorder %s15, 3
    %p243 = pnand %p241, %p242
    %p244 = pneg %p243
    // Predicated region
    $region9: #{_lambda_.1} parent=5 // pred_check
      _
    $region10: #{_lambda_.1} parent=5 // pred_check_branch
      %246 = sbr.rel (%p243) target = $region12
    $region11: #{_lambda_.1} parent=5 // pred_region
      %s247 = ssub.s32 %s15, 1
      // Predicated region
      $region13: #{_lambda_.1} parent=11 // pred_check
        %p248 = pneg %p76
      $region14: #{_lambda_.1} parent=11 // pred_check_branch
        %250 = sbr.rel (%p248) target = $region16
      $region15: #{_lambda_.1} parent=11 // pred_region
        _
      $region16: #{_lambda_.1} parent=11 // pred_fallthru
        _
      // Predicated region
      $region17: #{_lambda_.1} parent=11 // pred_check
        %p251 = pneg %p97
      $region18: #{_lambda_.1} parent=11 // pred_check_branch
        %253 = sbr.rel (%p251) target = $region20
      $region19: #{_lambda_.1} parent=11 // pred_region
        _
      $region20: #{_lambda_.1} parent=11 // pred_fallthru
        _
      // Predicated region
      $region21: #{_lambda_.1} parent=11 // pred_check
        %p254 = pneg %p118
      $region22: #{_lambda_.1} parent=11 // pred_check_branch
        %256 = sbr.rel (%p254) target = $region24
      $region23: #{_lambda_.1} parent=11 // pred_region
        _
      $region24: #{_lambda_.1} parent=11 // pred_fallthru
        _
      // Predicated region
      $region25: #{_lambda_.1} parent=11 // pred_check
        %p257 = pneg %p139
      $region26: #{_lambda_.1} parent=11 // pred_check_branch
        %259 = sbr.rel (%p257) target = $region28
      $region27: #{_lambda_.1} parent=11 // pred_region
        _
      $region28: #{_lambda_.1} parent=11 // pred_fallthru
        _
      // Predicated region
      $region29: #{_lambda_.1} parent=11 // pred_check
        %p260 = pneg %p160
      $region30: #{_lambda_.1} parent=11 // pred_check_branch
        %262 = sbr.rel (%p260) target = $region32
      $region31: #{_lambda_.1} parent=11 // pred_region
        _
      $region32: #{_lambda_.1} parent=11 // pred_fallthru
        _
      // Predicated region
      $region33: #{_lambda_.1} parent=11 // pred_check
        %p263 = pneg %p181
      $region34: #{_lambda_.1} parent=11 // pred_check_branch
        %265 = sbr.rel (%p263) target = $region36
      $region35: #{_lambda_.1} parent=11 // pred_region
        _
      $region36: #{_lambda_.1} parent=11 // pred_fallthru
        _
    $region12: #{_lambda_.1} parent=5 // pred_fallthru
      _
    %p266 = scmp.lt.s32.totalorder %s15, 2
    // Predicated region
    $region37: #{_lambda_.1} parent=5 // pred_check
      %p267 = pneg %p266
    $region38: #{_lambda_.1} parent=5 // pred_check_branch
      %269 = sbr.rel (%p267) target = $region40
    $region39: #{_lambda_.1} parent=5 // pred_region
      // Predicated region
      $region41: #{_lambda_.1} parent=39 // pred_check
        %p270 = pneg %p49
      $region42: #{_lambda_.1} parent=39 // pred_check_branch
        %272 = sbr.rel (%p270) target = $region44
      $region43: #{_lambda_.1} parent=39 // pred_region
        %s273 = smul.u32 2, %s23
        %p274 = scmp.lt.s32.totalorder %s22, 1
        %s275 = scalar_select %p274, %s22, 1
        %p276 = scmp.lt.s32.totalorder %s273, 1
        %s277 = scalar_select %p276, %s273, 1
        %s278 = smul.addr %s275, 2
        %s279 = sadd.s32 %s277, %s278
        %s280 = smul.addr %s279, 4
        %s281 = scalar_lea.vmem %s0, %s280
        %s282 = smul.u32 2, %s23
      $region44: #{_lambda_.1} parent=39 // pred_fallthru
        _
    $region40: #{_lambda_.1} parent=5 // pred_fallthru
      _
    %p283 = scmp.le.s32.totalorder 1, %s15
    %p284 = scmp.lt.s32.totalorder %s15, 3
    %p285 = pnand %p283, %p284
    %p286 = pneg %p285
    // Predicated region
    $region45: #{_lambda_.1} parent=5 // pred_check
      _
    $region46: #{_lambda_.1} parent=5 // pred_check_branch
      %288 = sbr.rel (%p285) target = $region48
    $region47: #{_lambda_.1} parent=5 // pred_region
      %s289 = ssub.s32 %s15, 1
      %s290 = smul.u32 2, %s25
      %p291 = scmp.lt.s32.totalorder %s24, 1
      %s292 = scalar_select %p291, %s24, 1
      %p293 = scmp.lt.s32.totalorder %s290, 1
      %s294 = scalar_select %p293, %s290, 1
      %s295 = smul.addr %s292, 2
      %s296 = sadd.s32 %s294, %s295
      %s297 = smul.addr %s296, 4
      %s298 = scalar_lea.vmem %s0, %s297
      %p299 = pneg %p55
      %p300 = pneg %p52
      %p301 = pneg %p76
      %p302 = pneg %p73
      %p303 = pneg %p97
      %p304 = pneg %p94
      %p305 = pneg %p118
      %p306 = pneg %p115
      %p307 = pneg %p139
      %p308 = pneg %p136
      %p309 = pneg %p160
      %p310 = pneg %p157
      %p311 = pneg %p181
      %p312 = pneg %p178
      %p313 = pneg %p207
      %p314 = pneg %p204
      %p315 = scmp.lt.s32.totalorder %s24, 1
      %s316 = scalar_select %p315, %s24, 1
      %s317 = smul.addr %s316, 8
      %s318 = scalar_lea.vmem %s7, %s317
      %p319 = pneg %p233
      %p320 = pneg %p230
      %p321 = scmp.lt.s32.totalorder %s24, 1
      %s322 = scalar_select %p321, %s24, 1
      %s323 = smul.addr %s322, 4
      %s324 = smul.addr %s323, 8
      %s325 = scalar_lea.vmem %s8, %s324
      %s326 = smul.u32 2, %s25
      %p327 = scmp.lt.s32.totalorder %s24, 1
      %s328 = scalar_select %p327, %s24, 1
      %p329 = scmp.lt.s32.totalorder %s326, 1
      %s330 = scalar_select %p329, %s326, 1
      %s331 = smul.addr %s328, 2
      %s332 = sadd.s32 %s330, %s331
      %s333 = smul.addr %s332, 4
      %s334 = scalar_lea.vmem %s0, %s333
      %s335 = smul.u32 2, %s25
      %p336 = scmp.lt.s32.totalorder %s24, 1
      %s337 = scalar_select %p336, %s24, 1
      %s338 = smul.addr %s337, 8
      %s339 = scalar_lea.vmem %s7, %s338
      %p340 = scmp.lt.s32.totalorder %s24, 1
      %s341 = scalar_select %p340, %s24, 1
      %s342 = smul.addr %s341, 4
      %s343 = smul.addr %s342, 8
      %s344 = scalar_lea.vmem %s8, %s343
      %p345 = scmp.eq.s32.totalorder %s25, 0
      // Predicated region
      $region49: #{_lambda_.1} parent=47 // pred_check
        %p346 = pneg %p345
      $region50: #{_lambda_.1} parent=47 // pred_check_branch
        %348 = sbr.rel (%p346) target = $region52
      $region51: #{_lambda_.1} parent=47 // pred_region
        %vm349 = vcmask 7168
        %350 = vst.msk [vmem:[#allocation2] sm:$0xff] %vm349, 0.0
        %351 = vst.msk [vmem:[#allocation2 + $0x8] sm:$0xff] %vm349, 0.0
        %352 = vst.msk [vmem:[#allocation2 + $0x10] sm:$0xff] %vm349, 0.0
        %353 = vst.msk [vmem:[#allocation2 + $0x18] sm:$0xff] %vm349, 0.0
      $region52: #{_lambda_.1} parent=47 // pred_fallthru
        _
      %v354 = vld [vmem:[%s1] sm:$0xff]
      %v355 = vld [vmem:[%s1 + $0x8] sm:$0xff]
      %v356 = vld [vmem:[%s1 + $0x10] sm:$0xff]
      %v357 = vld [vmem:[%s1 + $0x18] sm:$0xff]
      %v358 = vld [vmem:[%s2] sm:$0xff]
      %v359 = vld [vmem:[%s2 + $0x8] sm:$0xff]
      %v360 = vld [vmem:[%s2 + $0x10] sm:$0xff]
      %v361 = vld [vmem:[%s2 + $0x18] sm:$0xff]
      %v362 = vld [vmem:[%s334] sm:$0xff]
      %364 = vset.pattern.permute.xlu0 0
      %365 = vperm.xlu0 %364, %v358
      %v366 = vpop.permute.xlu0 %365
      %369 = vset.pattern.permute.xlu0 0
      %370 = vperm.xlu0 %369, %v359
      %v371 = vpop.permute.xlu0 %370
      %374 = vset.pattern.permute.xlu0 0
      %375 = vperm.xlu0 %374, %v360
      %v376 = vpop.permute.xlu0 %375
      %379 = vset.pattern.permute.xlu0 0
      %380 = vperm.xlu0 %379, %v361
      %v381 = vpop.permute.xlu0 %380
      %v384 = vcombine.high %v362, %v362
      %vm385 = vcmask 31744
      %v387 = vsel %vm385, %v354, 0
      %v390 = vsel %vm385, %v355, 0
      %v393 = vsel %vm385, %v356, 0
      %v396 = vsel %vm385, %v357, 0
      %vm398 = vcmask 1043456
      %v399 = vsel %vm398, %v362, 0
      %v401 = vsel %vm398, %v384, 0
      %403 = vmatprep.subr.mxu0 0.0
      %404 = vmatpush1.msra.mxu0 0.0
      %405 = vmatprep.subr.mxu0 0.0
      %406 = vmatpush1.msra.mxu0 0.0
      %407 = vmatprep.subr.mxu0 0.0
      %408 = vmatpush1.msra.mxu0 0.0
      %409 = vmatprep.subr.mxu0 0.0
      %410 = vmatpush1.msra.mxu0 0.0
      %411 = vmatprep.subr.mxu0 0.0
      %412 = vmatpush1.msra.mxu0 0.0
      %413 = vmatprep.subr.mxu0 0.0
      %414 = vmatpush1.msra.mxu0 0.0
      %415 = vmatprep.subr.mxu0 0.0
      %416 = vmatpush1.msra.mxu0 0.0
      %417 = vmatprep.subr.mxu0 0.0
      %418 = vmatpush1.msra.mxu0 0.0
      %419 = vmatprep.subr.mxu0 0.0
      %420 = vmatpush1.msra.mxu0 0.0
      %421 = vmatprep.subr.mxu0 0.0
      %422 = vmatpush1.msra.mxu0 0.0
      %423 = vmatprep.subr.mxu0 0.0
      %424 = vmatpush1.msra.mxu0 0.0
      %425 = vmatprep.subr.mxu0 0.0
      %426 = vmatpush1.msra.mxu0 0.0
      %427 = vmatprep.subr.mxu0 0.0
      %428 = vmatpush1.msra.mxu0 0.0
      %429 = vmatprep.subr.mxu0 0.0
      %430 = vmatpush1.msra.mxu0 0.0
      %431 = vmatprep.subr.mxu0 0.0
      %432 = vmatpush1.msra.mxu0 0.0
      %433 = vmatprep.subr.mxu0 %v401
      %434 = vmatpush1.msra.mxu0 %v399
      %435 = vmatprep.subr.mxu0 0.0
      %436 = vmatpush2.msra.mxu0 0.0
      %437 = vmatprep.subr.mxu0 0.0
      %438 = vmatpush2.msra.mxu0 0.0
      %439 = vmatprep.subr.mxu0 0.0
      %440 = vmatpush2.msra.mxu0 0.0
      %441 = vmatprep.subr.mxu0 0.0
      %442 = vmatpush2.msra.mxu0 0.0
      %443 = vmatprep.subr.mxu0 0.0
      %444 = vmatpush2.msra.mxu0 0.0
      %445 = vmatprep.subr.mxu0 0.0
      %446 = vmatpush2.msra.mxu0 0.0
      %447 = vmatprep.subr.mxu0 0.0
      %448 = vmatpush2.msra.mxu0 0.0
      %449 = vmatprep.subr.mxu0 0.0
      %450 = vmatpush2.msra.mxu0 0.0
      %451 = vmatprep.subr.mxu0 0.0
      %452 = vmatpush2.msra.mxu0 0.0
      %453 = vmatprep.subr.mxu0 0.0
      %454 = vmatpush2.msra.mxu0 0.0
      %455 = vmatprep.subr.mxu0 0.0
      %456 = vmatpush2.msra.mxu0 0.0
      %457 = vmatprep.subr.mxu0 0.0
      %458 = vmatpush2.msra.mxu0 0.0
      %459 = vmatprep.subr.mxu0 0.0
      %460 = vmatpush2.msra.mxu0 0.0
      %461 = vmatprep.subr.mxu0 0.0
      %462 = vmatpush2.msra.mxu0 0.0
      %463 = vmatprep.subr.mxu0 0.0
      %464 = vmatpush2.msra.mxu0 0.0
      %465 = vmatprep.subr.mxu0 0.0
      %466 = vmatpush2.msra.mxu0 0.0
      %467 = vmatprep.mubr.f32.mxu0 0.0
      %468 = vmatmul.mubr.f32.gmra.mxu0 %v387
      %v469 = vpop.f32.mrf.mxu0
      %v470 = vadd.f32 %v366, %v469
      %v471 = vpop.f32.mrf.mxu0
      %v472 = vadd.f32 %v366, %v471
      %473 = vmatprep.mubr.f32.mxu0 0.0
      %474 = vmatmul.mubr.f32.gmra.mxu0 %v390
      %v475 = vpop.f32.mrf.mxu0
      %v476 = vadd.f32 %v371, %v475
      %v477 = vpop.f32.mrf.mxu0
      %v478 = vadd.f32 %v371, %v477
      %479 = vmatprep.mubr.f32.mxu0 0.0
      %480 = vmatmul.mubr.f32.gmra.mxu0 %v393
      %v481 = vpop.f32.mrf.mxu0
      %v482 = vadd.f32 %v376, %v481
      %v483 = vpop.f32.mrf.mxu0
      %v484 = vadd.f32 %v376, %v483
      %485 = vmatprep.mubr.f32.mxu0 0.0
      %486 = vmatmul.mubr.f32.gmra.mxu0 %v396
      %v487 = vpop.f32.mrf.mxu0
      %v488 = vadd.f32 %v381, %v487
      %v489 = vpop.f32.mrf.mxu0
      %v490 = vadd.f32 %v381, %v489
      %491 = vdwg.mxu0
      %v492 = vmax.f32 %v470, 0.0
      %v493 = vmax.f32 %v472, 0.0
      %v494 = vmax.f32 %v476, 0.0
      %v495 = vmax.f32 %v478, 0.0
      %v496 = vmax.f32 %v482, 0.0
      %v497 = vmax.f32 %v484, 0.0
      %v498 = vmax.f32 %v488, 0.0
      %v499 = vmax.f32 %v490, 0.0
      %v500 = vld [vmem:[#allocation2] sm:$0xff]
      %v501 = vld [vmem:[#allocation2 + $0x8] sm:$0xff]
      %v502 = vld [vmem:[#allocation2 + $0x10] sm:$0xff]
      %v503 = vld [vmem:[#allocation2 + $0x18] sm:$0xff]
      %v504 = vadd.f32 %v492, %v493
      %505 = vadd.xlane.f32.xlu0 %v504
      %v506 = vpop.xlane.xlu0 %505
      %v507 = vadd.f32 %v494, %v495
      %508 = vadd.xlane.f32.xlu0 %v507
      %v509 = vpop.xlane.xlu0 %508
      %v510 = vadd.f32 %v496, %v497
      %511 = vadd.xlane.f32.xlu0 %v510
      %v512 = vpop.xlane.xlu0 %511
      %v513 = vadd.f32 %v498, %v499
      %514 = vadd.xlane.f32.xlu0 %v513
      %v515 = vpop.xlane.xlu0 %514
      %v516 = vadd.f32 %v500, %v506
      %v517 = vadd.f32 %v501, %v509
      %v518 = vadd.f32 %v502, %v512
      %v519 = vadd.f32 %v503, %v515
      %vm520 = vcmask 7168
      %521 = vst.msk [vmem:[#allocation2] sm:$0xff] %vm520, %v516
      %522 = vst.msk [vmem:[#allocation2 + $0x8] sm:$0xff] %vm520, %v517
      %523 = vst.msk [vmem:[#allocation2 + $0x10] sm:$0xff] %vm520, %v518
      %524 = vst.msk [vmem:[#allocation2 + $0x18] sm:$0xff] %vm520, %v519
      // Predicated region
      $region53: #{_lambda_.1} parent=47 // pred_check
        %p525 = pneg %p345
      $region54: #{_lambda_.1} parent=47 // pred_check_branch
        %527 = sbr.rel (%p525) target = $region56
      $region55: #{_lambda_.1} parent=47 // pred_region
        %v528 = vld [vmem:[#allocation2] sm:$0xff]
        %v529 = vld [vmem:[#allocation2 + $0x8] sm:$0xff]
        %v530 = vld [vmem:[#allocation2 + $0x10] sm:$0xff]
        %v531 = vld [vmem:[#allocation2 + $0x18] sm:$0xff]
        %v532 = vmul.f32 %v528, 0.00390625
        %v533 = vmul.f32 %v529, 0.00390625
        %v534 = vmul.f32 %v530, 0.00390625
        %v535 = vmul.f32 %v531, 0.00390625
        %v536 = vld [vmem:[%s3] sm:$0xff]
        %v537 = vld [vmem:[%s3 + $0x8] sm:$0xff]
        %v538 = vld [vmem:[%s3 + $0x10] sm:$0xff]
        %v539 = vld [vmem:[%s3 + $0x18] sm:$0xff]
        %v540 = vmul.f32 %v532, %v536
        %v541 = vmul.f32 %v533, %v537
        %v542 = vmul.f32 %v534, %v538
        %v543 = vmul.f32 %v535, %v539
        %v544 = vld [vmem:[%s4] sm:$0xff]
        %v545 = vld [vmem:[%s4 + $0x8] sm:$0xff]
        %v546 = vld [vmem:[%s4 + $0x10] sm:$0xff]
        %v547 = vld [vmem:[%s4 + $0x18] sm:$0xff]
        %v548 = vadd.f32 %v540, %v544
        %v549 = vadd.f32 %v541, %v545
        %v550 = vadd.f32 %v542, %v546
        %v551 = vadd.f32 %v543, %v547
        %v552 = vmul.f32 %v548, %v548
        %v553 = vmul.f32 %v549, %v549
        %v554 = vmul.f32 %v550, %v550
        %v555 = vmul.f32 %v551, %v551
        %v556 = vsel %vm520, %v552, 0.0
        %v557 = vsel %vm520, %v553, 0.0
        %v558 = vadd.f32 %v556, %v557
        %v559 = vsel %vm520, %v554, 0.0
        %v560 = vadd.f32 %v558, %v559
        %v561 = vsel %vm520, %v555, 0.0
        %v562 = vadd.f32 %v560, %v561
        %v563 = vrot.slane %v562, 4
        %v564 = vadd.f32 %v562, %v563
        %v565 = vrot.slane %v564, 2
        %v566 = vadd.f32 %v564, %v565
        %v567 = vrot.slane %v566, 1
        %v568 = vadd.f32 %v566, %v567
        %v569 = vmax.f32 %v568, 1e-24
        %v570 = vrsqrt.pop %v569
        %v571 = vmul.f32 %v548, %v570
        %v572 = vmul.f32 %v549, %v570
        %v573 = vmul.f32 %v550, %v570
        %v574 = vmul.f32 %v551, %v570
        %575 = vst.msk [vmem:[%s344] sm:$0xff] %vm520, %v571
        %576 = vst.msk [vmem:[%s344 + $0x8] sm:$0xff] %vm520, %v572
        %577 = vst.msk [vmem:[%s344 + $0x10] sm:$0xff] %vm520, %v573
        %578 = vst.msk [vmem:[%s344 + $0x18] sm:$0xff] %vm520, %v574
        %v579 = vld [vmem:[%s5] sm:$0xff]
        %v580 = vld [vmem:[%s6] sm:$0xff]
        %vm581 = vcmask 261120
        %v583 = vsel %vm581, %v579, 0
        %585 = vmatprep.subr.mxu0 0.0
        %586 = vmatpush1.msra.mxu0 0.0
        %587 = vmatprep.subr.mxu0 0.0
        %588 = vmatpush1.msra.mxu0 0.0
        %589 = vmatprep.subr.mxu0 0.0
        %590 = vmatpush1.msra.mxu0 0.0
        %591 = vmatprep.subr.mxu0 0.0
        %592 = vmatpush1.msra.mxu0 0.0
        %593 = vmatprep.subr.mxu0 0.0
        %594 = vmatpush1.msra.mxu0 0.0
        %595 = vmatprep.subr.mxu0 0.0
        %596 = vmatpush1.msra.mxu0 0.0
        %597 = vmatprep.subr.mxu0 0.0
        %598 = vmatpush1.msra.mxu0 0.0
        %599 = vmatprep.subr.mxu0 0.0
        %600 = vmatpush1.msra.mxu0 0.0
        %601 = vmatprep.subr.mxu0 0.0
        %602 = vmatpush1.msra.mxu0 0.0
        %603 = vmatprep.subr.mxu0 0.0
        %604 = vmatpush1.msra.mxu0 0.0
        %605 = vmatprep.subr.mxu0 0.0
        %606 = vmatpush1.msra.mxu0 0.0
        %607 = vmatprep.subr.mxu0 0.0
        %608 = vmatpush1.msra.mxu0 0.0
        %609 = vmatprep.subr.mxu0 0.0
        %610 = vmatpush1.msra.mxu0 %v574
        %611 = vmatprep.subr.mxu0 0.0
        %612 = vmatpush1.msra.mxu0 %v573
        %613 = vmatprep.subr.mxu0 0.0
        %614 = vmatpush1.msra.mxu0 %v572
        %615 = vmatprep.subr.mxu0 0.0
        %616 = vmatpush1.msra.mxu0 %v571
        %617 = vmatprep.subr.mxu0 0.0
        %618 = vmatpush2.msra.mxu0 0.0
        %619 = vmatprep.subr.mxu0 0.0
        %620 = vmatpush2.msra.mxu0 0.0
        %621 = vmatprep.subr.mxu0 0.0
        %622 = vmatpush2.msra.mxu0 0.0
        %623 = vmatprep.subr.mxu0 0.0
        %624 = vmatpush2.msra.mxu0 0.0
        %625 = vmatprep.subr.mxu0 0.0
        %626 = vmatpush2.msra.mxu0 0.0
        %627 = vmatprep.subr.mxu0 0.0
        %628 = vmatpush2.msra.mxu0 0.0
        %629 = vmatprep.subr.mxu0 0.0
        %630 = vmatpush2.msra.mxu0 0.0
        %631 = vmatprep.subr.mxu0 0.0
        %632 = vmatpush2.msra.mxu0 0.0
        %633 = vmatprep.subr.mxu0 0.0
        %634 = vmatpush2.msra.mxu0 0.0
        %635 = vmatprep.subr.mxu0 0.0
        %636 = vmatpush2.msra.mxu0 0.0
        %637 = vmatprep.subr.mxu0 0.0
        %638 = vmatpush2.msra.mxu0 0.0
        %639 = vmatprep.subr.mxu0 0.0
        %640 = vmatpush2.msra.mxu0 0.0
        %641 = vmatprep.subr.mxu0 0.0
        %642 = vmatpush2.msra.mxu0 0.0
        %643 = vmatprep.subr.mxu0 0.0
        %644 = vmatpush2.msra.mxu0 0.0
        %645 = vmatprep.subr.mxu0 0.0
        %646 = vmatpush2.msra.mxu0 0.0
        %647 = vmatprep.subr.mxu0 0.0
        %648 = vmatpush2.msra.mxu0 0.0
        %649 = vmatprep.mubr.f32.mxu0 0.0
        %650 = vmatmul.mubr.f32.gmra.mxu0 %v583
        %v651 = vpop.f32.mrf.mxu0
        %v652 = vadd.f32 %v580, %v651
        %v653 = vpop.f32.mrf.mxu0
        %654 = vdwg.mxu0
        %655 = vst.msk [vmem:[%s339] sm:$0xff] %vm520, %v652
      $region56: #{_lambda_.1} parent=47 // pred_fallthru
        _
      %p656 = scmp.lt.s32.totalorder %s24, 1
      %s657 = scalar_select %p656, %s24, 1
      %s658 = smul.addr %s657, 8
      %s659 = scalar_lea.vmem %s7, %s658
      %p660 = scmp.lt.s32.totalorder %s24, 1
      %s661 = scalar_select %p660, %s24, 1
      %s662 = smul.addr %s661, 4
      %s663 = smul.addr %s662, 8
      %s664 = scalar_lea.vmem %s8, %s663
      // Predicated region
      $region57: #{_lambda_.1} parent=47 // pred_check
        %p665 = pneg %p204
      $region58: #{_lambda_.1} parent=47 // pred_check_branch
        %667 = sbr.rel (%p665) target = $region60
      $region59: #{_lambda_.1} parent=47 // pred_region
        _
      $region60: #{_lambda_.1} parent=47 // pred_fallthru
        _
      // Predicated region
      $region61: #{_lambda_.1} parent=47 // pred_check
        %p668 = pneg %p230
      $region62: #{_lambda_.1} parent=47 // pred_check_branch
        %670 = sbr.rel (%p668) target = $region64
      $region63: #{_lambda_.1} parent=47 // pred_region
        _
      $region64: #{_lambda_.1} parent=47 // pred_fallthru
        _
    $region48: #{_lambda_.1} parent=5 // pred_fallthru
      _
    %p671 = scmp.le.s32.totalorder 2, %s15
    // Predicated region
    $region65: #{_lambda_.1} parent=5 // pred_check
      %p672 = pneg %p671
    $region66: #{_lambda_.1} parent=5 // pred_check_branch
      %674 = sbr.rel (%p672) target = $region68
    $region67: #{_lambda_.1} parent=5 // pred_region
      %s675 = ssub.s32 %s15, 2
      // Predicated region
      $region69: #{_lambda_.1} parent=67 // pred_check
        %p676 = pneg %p210
      $region70: #{_lambda_.1} parent=67 // pred_check_branch
        %678 = sbr.rel (%p676) target = $region72
      $region71: #{_lambda_.1} parent=67 // pred_region
        %p679 = scmp.lt.s32.totalorder %s26, 1
        %s680 = scalar_select %p679, %s26, 1
        %s681 = smul.addr %s680, 8
        %s682 = scalar_lea.vmem %s7, %s681
      $region72: #{_lambda_.1} parent=67 // pred_fallthru
        _
      // Predicated region
      $region73: #{_lambda_.1} parent=67 // pred_check
        %p683 = pneg %p236
      $region74: #{_lambda_.1} parent=67 // pred_check_branch
        %685 = sbr.rel (%p683) target = $region76
      $region75: #{_lambda_.1} parent=67 // pred_region
        %p686 = scmp.lt.s32.totalorder %s26, 1
        %s687 = scalar_select %p686, %s26, 1
        %s688 = smul.addr %s687, 4
        %s689 = smul.addr %s688, 8
        %s690 = scalar_lea.vmem %s8, %s689
      $region76: #{_lambda_.1} parent=67 // pred_fallthru
        _
    $region68: #{_lambda_.1} parent=5 // pred_fallthru
      _
  $region6: #{_lambda_.1} parent=0 // loop_footer
    %s19 = sadd.s32 1, %s15
  $region7: #{_lambda_.1} parent=0 // loop_footer_branch
    %14 = sbr.rel target = $region3
  $region8: #{_lambda_.1} parent=0 // loop_exit
    _

</llo_original>
